<compile_context>
chip_gen: v5e
topology: v5e:2x2
jax: 0.10.0
libtpu: 0.0.40
codegen_flags: <defaults>
</compile_context>

<pallas_src>
import functools
import math

import jax
import jax.numpy as jnp
from jax.experimental import pallas as pl
from jax.experimental.pallas import tpu as pltpu


# ---------------------------------------------------------------------------
# Kernels
# ---------------------------------------------------------------------------
def _pe_add_kernel(x_ref, pe_ref, o_ref):
    """out = x + pe   (eval mode / dropout_p == 0)."""
    x = x_ref[...]                       # (1, ts, D)
    pe = pe_ref[...]                     # (ts, D)
    o_ref[...] = (x + pe[None].astype(x.dtype)).astype(o_ref.dtype)


def _pe_add_dropout_kernel(x_ref, pe_ref, scale_ref, o_ref):
    """out = (x + pe) * scale, scale in {0, 1/(1-p)} (training dropout)."""
    x = x_ref[...]                       # (1, ts, D)
    pe = pe_ref[...]                     # (ts, D)
    y = x + pe[None].astype(x.dtype)
    o_ref[...] = (y * scale_ref[...]).astype(o_ref.dtype)


# ---------------------------------------------------------------------------
# Helpers
# ---------------------------------------------------------------------------
def sinusoidal_pe_table(seq_len, d_model, dtype=jnp.float32):
    """Matches the PyTorch __init__: pe[:,0::2]=sin, pe[:,1::2]=cos."""
    position = jnp.arange(seq_len, dtype=jnp.float32)[:, None]          # (S, 1)
    div_term = jnp.exp(
        jnp.arange(0, d_model, 2, dtype=jnp.float32)
        * (-math.log(10000.0) / d_model))                               # (D/2,)
    ang = position * div_term                                           # (S, D/2)
    # interleave sin/cos -> columns [sin0, cos0, sin1, cos1, ...]
    pe = jnp.stack([jnp.sin(ang), jnp.cos(ang)], axis=-1).reshape(seq_len, d_model)
    return pe.astype(dtype)


def _pick_seq_tile(S, target=512):
    """Largest multiple-of-8 divisor of S that is <= target (else full S)."""
    if S <= target:
        return S
    best = None
    for ts in range(8, target + 1, 8):
        if S % ts == 0:
            best = ts
    return best if best is not None else S


# ---------------------------------------------------------------------------
# Public wrapper
# ---------------------------------------------------------------------------
def positional_encoding(x, pe_table, *, dropout_p=0.0, key=None):
    """x: (B, S, D).  pe_table: (seq_len >= S, D).  Returns dropout(x + pe)."""
    B, S, D = x.shape
    pe = pe_table[:S]                                   # pe[:, :x.shape[1], :]

    ts = _pick_seq_tile(S)
    assert S % ts == 0
    grid = (S // ts, B)                                 # seq-tile outer, batch inner

    x_spec = pl.BlockSpec((1, ts, D), lambda si, bi: (bi, si, 0))
    pe_spec = pl.BlockSpec((ts, D), lambda si, bi: (si, 0))  # constant over inner axis
    out_spec = pl.BlockSpec((1, ts, D), lambda si, bi: (bi, si, 0))
    cparams = pltpu.CompilerParams(
        dimension_semantics=("parallel", "parallel"))

    if dropout_p > 0.0:
        if key is None:
            raise ValueError("dropout_p > 0 requires a PRNG key")
        inv_keep = 1.0 / (1.0 - float(dropout_p))
        keep = jax.random.bernoulli(key, 1.0 - float(dropout_p), x.shape)
        scale = keep.astype(x.dtype) * jnp.asarray(inv_keep, x.dtype)   # 0 or 1/(1-p)
        return pl.pallas_call(
            _pe_add_dropout_kernel,
            out_shape=jax.ShapeDtypeStruct(x.shape, x.dtype),
            grid=grid,
            in_specs=[x_spec, pe_spec,
                      pl.BlockSpec((1, ts, D), lambda si, bi: (bi, si, 0))],
            out_specs=out_spec,
            compiler_params=cparams,
        )(x, pe, scale)

    return pl.pallas_call(
        _pe_add_kernel,
        out_shape=jax.ShapeDtypeStruct(x.shape, x.dtype),
        grid=grid,
        in_specs=[x_spec, pe_spec],
        out_specs=out_spec,
        compiler_params=cparams,
    )(x, pe)


# ---------------------------------------------------------------------------
# Demo / correctness check
# ---------------------------------------------------------------------------
if __name__ == "__main__":
    key = jax.random.PRNGKey(0)
    kx, kdrop = jax.random.split(key)

    B, S, D = 4, 64, 128        # batch, seq_len, d_model
    dropout_p = 0.1

    x = jax.random.normal(kx, (B, S, D), dtype=jnp.float32)
    pe_table = sinusoidal_pe_table(S, D)

    # ---- eval mode (dropout off): exact check against pure-JAX reference ----
    out_nodrop = positional_encoding(x, pe_table, dropout_p=0.0)
    ref_nodrop = x + pe_table[None, :S, :]
    assert jnp.allclose(out_nodrop, ref_nodrop, atol=1e-6, rtol=1e-6), \
        "mismatch (no dropout)"

    # ---- training mode: deterministic key -> mask is reproducible in ref ----
    out_drop = positional_encoding(x, pe_table, dropout_p=dropout_p, key=kdrop)
    keep_ref = jax.random.bernoulli(kdrop, 1.0 - dropout_p, x.shape)
    ref_drop = jnp.where(keep_ref, (x + pe_table[None, :S, :]) / (1.0 - dropout_p), 0.0)
    assert jnp.allclose(out_drop, ref_drop, atol=1e-5, rtol=1e-5), \
        "mismatch (dropout)"

    jax.block_until_ready(out_drop)
    assert out_drop.shape == (B, S, D)

    print("KERNEL_OK")
</pallas_src>

<mosaic_0001>
module attributes {stable_mosaic.version = 11 : i64} {
  func.func @_pe_add_kernel(%arg0: i32, %arg1: i32, %arg2: memref<1x64x128xf32, #tpu.memory_space<vmem>>, %arg3: memref<64x128xf32, #tpu.memory_space<vmem>>, %arg4: memref<1x64x128xf32, #tpu.memory_space<vmem>>) attributes {dimension_semantics = [#tpu.dimension_semantics<parallel>, #tpu.dimension_semantics<parallel>], iteration_bounds = array<i64: 1, 4>, scalar_prefetch = 0 : i64, scratch_operands = 0 : i64, tpu.core_type = #tpu.core_type<tc>, window_params = [{transform_indices = @transform_0, window_bounds = array<i64: 1, 64, 128>}, {transform_indices = @transform_1, window_bounds = array<i64: 64, 128>}, {transform_indices = @transform_2, window_bounds = array<i64: 1, 64, 128>}]} {
    %c0 = arith.constant 0 : index
    %c0_0 = arith.constant 0 : index
    %c0_1 = arith.constant 0 : index
    %0 = vector.load %arg2[%c0, %c0_0, %c0_1] : memref<1x64x128xf32, #tpu.memory_space<vmem>>, vector<1x64x128xf32>
    %c0_2 = arith.constant 0 : index
    %c0_3 = arith.constant 0 : index
    %1 = vector.load %arg3[%c0_2, %c0_3] : memref<64x128xf32, #tpu.memory_space<vmem>>, vector<64x128xf32>
    %2 = vector.shape_cast %1 : vector<64x128xf32> to vector<1x64x128xf32>
    %3 = arith.addf %0, %2 : vector<1x64x128xf32>
    %c0_4 = arith.constant 0 : index
    %c0_5 = arith.constant 0 : index
    %c0_6 = arith.constant 0 : index
    %4 = vector.load %arg4[%c0_4, %c0_5, %c0_6] : memref<1x64x128xf32, #tpu.memory_space<vmem>>, vector<1x64x128xf32>
    tpu.vector_store %arg4[%c0_4, %c0_5, %c0_6], %3 {strides = array<i32>} : memref<1x64x128xf32, #tpu.memory_space<vmem>>, vector<1x64x128xf32>,
    return
  }
  func.func @transform_0(%arg0: i32, %arg1: i32) -> (i32, i32, i32) {
    %c0_i32 = arith.constant 0 : i32
    %c0_i32_0 = arith.constant 0 : i32
    return %arg1, %arg0, %c0_i32 : i32, i32, i32
  }
  func.func @transform_1(%arg0: i32, %arg1: i32) -> (i32, i32) {
    %c0_i32 = arith.constant 0 : i32
    %c0_i32_0 = arith.constant 0 : i32
    return %arg0, %c0_i32 : i32, i32
  }
  func.func @transform_2(%arg0: i32, %arg1: i32) -> (i32, i32, i32) {
    %c0_i32 = arith.constant 0 : i32
    %c0_i32_0 = arith.constant 0 : i32
    return %arg1, %arg0, %c0_i32 : i32, i32, i32
  }
}

</mosaic_0001>

<llo_original>
// kernel: tpu_custom_call.1
$region0: #{tpu_custom_call.1}
  #allocation0 [shape = 'u32[]', space=smem, size = 0x4, offset = 0x4, fixed_abs, tag = 'smem constant byte address 0x4 - core index']
  #allocation1 [shape = 'u32[72,128]{1,0:T(1,128)}', space=vmem, size = 0x9000, scoped, tag = 'internal scratch']
  %s0 = inlined_call_operand.hbm [shape: f32[4,64,128], index: 0, kind: input, shape index: {}]
  %s1 = inlined_call_operand.hbm [shape: f32[64,128], index: 1, kind: input, shape index: {}]
  %s2 = inlined_call_operand.hbm [shape: f32[4,64,128], index: 2, kind: output, shape index: {}]
  %s3 = sld [smem:[#allocation0]]
  $region49: #{tpu_custom_call.1} parent=0
    _
  %s5 = ssub.s32 1, %s3
  %s6 = scalar_select 0, %s5, %s3
  $region1: #{tpu_custom_call.1} parent=0
    #allocation2 [shape = 'u8[65536]{0}', space=vmem, size = 0x10000, scoped, tag = 'input window, operand 0']
    #allocation3 [shape = 's32[2]{0}', space=sflag, size = 0x8, scoped, tag = 'scoped memory for tpu_custom_call.1']
    #allocation4 [shape = 's32[2]{0}', space=sflag, size = 0x8, scoped, tag = 'scoped memory for tpu_custom_call.1']
    #allocation5 [shape = 'u8[32768]{0}', space=vmem, size = 0x8000, scoped, tag = 'input window, operand 1, single buffered']
    #allocation6 [shape = 's32[1]{0}', space=sflag, size = 0x4, scoped, tag = 'scoped memory for tpu_custom_call.1']
    #allocation7 [shape = 'u8[65536]{0}', space=vmem, size = 0x10000, scoped, tag = 'output window, operand 0']
    %7 = vsyncpa [#allocation3], 0
    %s8 = scalar_lea.sflag [#allocation3], 1
    %9 = vsyncpa %s8, 0
    %10 = vsyncpa [#allocation6], 0
    %11 = vsyncpa [#allocation4], 0
    %s12 = scalar_lea.sflag [#allocation4], 1
    %13 = vsyncpa %s12, 0
    loop: start=0, step=1, limit=6
    $region2: #{tpu_custom_call.1} parent=1 // loop_pre_header
      _
    $region3: #{tpu_custom_call.1} parent=1 // loop_header
      %s15 = sphi 0, %s19
      %p16 = scmp.ge.s32.totalorder %s15, 6
      %s22 = sphi 0, %s34
      %s23 = sphi 0, %s30
      %s24 = sphi 0, %s22
      %s25 = sphi 0, %s23
      %s26 = sphi 0, %s24
      %s27 = sphi 0, %s25
      %s39 = sphi 0, %s41
      %s42 = sphi 0, %s39
      %s43 = sphi 0, %s42
      %s59 = sphi 0, %s43
      %s65 = sphi 0, %s67
      %s68 = sphi 0, %s65
      %s69 = sphi 0, %s68
      %s85 = sphi 0, %s69
      %s93 = sphi 0, %s95
      %s96 = sphi 0, %s93
      %s97 = sphi 0, %s96
      %s113 = sphi 0, %s97
    $region4: #{tpu_custom_call.1} parent=1 // loop_header_branch
      %18 = sbr.rel (%p16) target = $region8
    $region5: #{tpu_custom_call.1} parent=1 // loop_body
      %s20 = ssub.s32 %s15, 1
      %s21 = ssub.s32 %s15, 2
      %s28 = sadd.s32 1, %s23
      %p29 = scmp.ge.s32.totalorder %s28, 4
      %s30 = scalar_select %p29, 0, %s28
      %s31 = sadd.s32 1, %s22
      %s32 = scalar_select %p29, %s31, %s22
      %p33 = scmp.ge.s32.totalorder %s32, 1
      %s34 = scalar_select %p33, 0, %s32
      %s35 = ssub.s32 %s23, %s30
      %s36 = ssub.s32 %s22, %s34
      %s37 = sor.u32 %s35, %s36
      %p38 = scmp.eq.s32.totalorder %s37, 0
      %s40 = sadd.s32 %s39, 1
      %s41 = scalar_select %p38, %s39, %s40
      %p44 = pneg %p38
      %p45 = scmp.eq.s32.totalorder %s15, 3
      %p46 = por %p44, %p45
      %p47 = scmp.ne.s32.totalorder %s39, %s42
      %p48 = scmp.eq.s32.totalorder %s15, 0
      %p49 = por %p47, %p48
      %p50 = scmp.ne.s32.totalorder %s39, %s42
      %p51 = scmp.eq.s32.totalorder %s20, 3
      %p52 = por %p50, %p51
      %p53 = scmp.ne.s32.totalorder %s42, %s43
      %p54 = scmp.eq.s32.totalorder %s20, 0
      %p55 = por %p53, %p54
      %p56 = scmp.ne.s32.totalorder %s42, %s43
      %p57 = scmp.eq.s32.totalorder %s21, 3
      %p58 = por %p56, %p57
      %p60 = scmp.ne.s32.totalorder %s43, %s59
      %p61 = scmp.eq.s32.totalorder %s21, 0
      %p62 = por %p60, %p61
      %s63 = ssub.s32 %s22, %s34
      %p64 = scmp.eq.s32.totalorder %s63, 0
      %s66 = sadd.s32 %s65, 1
      %s67 = scalar_select %p64, %s65, %s66
      %p70 = pneg %p64
      %p71 = scmp.eq.s32.totalorder %s15, 3
      %p72 = por %p70, %p71
      %p73 = scmp.ne.s32.totalorder %s65, %s68
      %p74 = scmp.eq.s32.totalorder %s15, 0
      %p75 = por %p73, %p74
      %p76 = scmp.ne.s32.totalorder %s65, %s68
      %p77 = scmp.eq.s32.totalorder %s20, 3
      %p78 = por %p76, %p77
      %p79 = scmp.ne.s32.totalorder %s68, %s69
      %p80 = scmp.eq.s32.totalorder %s20, 0
      %p81 = por %p79, %p80
      %p82 = scmp.ne.s32.totalorder %s68, %s69
      %p83 = scmp.eq.s32.totalorder %s21, 3
      %p84 = por %p82, %p83
      %p86 = scmp.ne.s32.totalorder %s69, %s85
      %p87 = scmp.eq.s32.totalorder %s21, 0
      %p88 = por %p86, %p87
      %s89 = ssub.s32 %s23, %s30
      %s90 = ssub.s32 %s22, %s34
      %s91 = sor.u32 %s89, %s90
      %p92 = scmp.eq.s32.totalorder %s91, 0
      %s94 = sadd.s32 %s93, 1
      %s95 = scalar_select %p92, %s93, %s94
      %p98 = pneg %p92
      %p99 = scmp.eq.s32.totalorder %s15, 3
      %p100 = por %p98, %p99
      %p101 = scmp.ne.s32.totalorder %s93, %s96
      %p102 = scmp.eq.s32.totalorder %s15, 0
      %p103 = por %p101, %p102
      %p104 = scmp.ne.s32.totalorder %s93, %s96
      %p105 = scmp.eq.s32.totalorder %s20, 3
      %p106 = por %p104, %p105
      %p107 = scmp.ne.s32.totalorder %s96, %s97
      %p108 = scmp.eq.s32.totalorder %s20, 0
      %p109 = por %p107, %p108
      %p110 = scmp.ne.s32.totalorder %s96, %s97
      %p111 = scmp.eq.s32.totalorder %s21, 3
      %p112 = por %p110, %p111
      %p114 = scmp.ne.s32.totalorder %s97, %s113
      %p115 = scmp.eq.s32.totalorder %s21, 0
      %p116 = por %p114, %p115
      %p117 = scmp.le.s32.totalorder 1, %s15
      %p118 = scmp.lt.s32.totalorder %s15, 5
      %p119 = pnand %p117, %p118
      %p120 = pneg %p119
      // Predicated region
      $region9: #{tpu_custom_call.1} parent=5 // pred_check
        _
      $region10: #{tpu_custom_call.1} parent=5 // pred_check_branch
        %122 = sbr.rel (%p119) target = $region12
      $region11: #{tpu_custom_call.1} parent=5 // pred_region
        %s123 = ssub.s32 %s15, 1
        // Predicated region
        $region13: #{tpu_custom_call.1} parent=11 // pred_check
          %p124 = pneg %p81
        $region14: #{tpu_custom_call.1} parent=11 // pred_check_branch
          %126 = sbr.rel (%p124) target = $region16
        $region15: #{tpu_custom_call.1} parent=11 // pred_region
          %s127 = smul.u32 8, %s24
          %129 = vsyncadd [#allocation6], 0
          %s130 = smul.addr %s127, 8
          %s131 = scalar_lea.hbm %s1, %s130
          %s132 = sshll.u32 %s131, 4
          %s133 = int_to_ptr.hbm [resolvable:$true] %s132
          %s134 = sshll.u32 [#allocation5], 4
          %s135 = int_to_ptr.vmem [resolvable:$true] %s134
          %140 = dma.hbm_to_vmem [thread:$0]  %s133, 1024, %s135, [#allocation6], 128, 128, 8
        $region16: #{tpu_custom_call.1} parent=11 // pred_fallthru
          _
      $region12: #{tpu_custom_call.1} parent=5 // pred_fallthru
        _
      %p141 = scmp.lt.s32.totalorder %s15, 4
      // Predicated region
      $region17: #{tpu_custom_call.1} parent=5 // pred_check
        %p142 = pneg %p141
      $region18: #{tpu_custom_call.1} parent=5 // pred_check_branch
        %144 = sbr.rel (%p142) target = $region20
      $region19: #{tpu_custom_call.1} parent=5 // pred_region
        // Predicated region
        $region21: #{tpu_custom_call.1} parent=19 // pred_check
          %p145 = pneg %p49
        $region22: #{tpu_custom_call.1} parent=19 // pred_check_branch
          %147 = sbr.rel (%p145) target = $region24
        $region23: #{tpu_custom_call.1} parent=19 // pred_region
          %s148 = sand.u32 %s39, 1
          %s149 = scalar_lea.sflag [#allocation3], %s148
          %s150 = sand.u32 %s39, 1
          %s151 = smul.addr %s150, 64
          %s152 = scalar_lea.vmem [#allocation2], %s151
          %s153 = smul.u32 8, %s22
          %155 = vsyncadd %s149, 0
          %s156 = smul.addr %s23, 8
          %s157 = sadd.s32 %s153, %s156
          %s158 = smul.addr %s157, 8
          %s159 = scalar_lea.hbm %s0, %s158
          %s160 = sshll.u32 %s159, 4
          %s161 = int_to_ptr.hbm [resolvable:$true] %s160
          %s162 = sshll.u32 %s152, 4
          %s163 = int_to_ptr.vmem [resolvable:$true] %s162
          %168 = dma.hbm_to_vmem [thread:$0]  %s161, 1024, %s163, %s149, 128, 128, 8
        $region24: #{tpu_custom_call.1} parent=19 // pred_fallthru
          _
      $region20: #{tpu_custom_call.1} parent=5 // pred_fallthru
        _
      %p169 = scmp.le.s32.totalorder 1, %s15
      %p170 = scmp.lt.s32.totalorder %s15, 5
      %p171 = pnand %p169, %p170
      %p172 = pneg %p171
      // Predicated region
      $region25: #{tpu_custom_call.1} parent=5 // pred_check
        _
      $region26: #{tpu_custom_call.1} parent=5 // pred_check_branch
        %174 = sbr.rel (%p171) target = $region28
      $region27: #{tpu_custom_call.1} parent=5 // pred_region
        %s175 = ssub.s32 %s15, 1
        %s176 = sand.u32 %s42, 1
        %s177 = scalar_lea.sflag [#allocation3], %s176
        %s178 = sand.u32 %s42, 1
        %s179 = smul.addr %s178, 64
        %s180 = scalar_lea.vmem [#allocation2], %s179
        // Predicated region
        $region29: #{tpu_custom_call.1} parent=27 // pred_check
          %p181 = pneg %p55
        $region30: #{tpu_custom_call.1} parent=27 // pred_check_branch
          %183 = sbr.rel (%p181) target = $region32
        $region31: #{tpu_custom_call.1} parent=27 // pred_region
          %185 = dma.done %s177, 1024
        $region32: #{tpu_custom_call.1} parent=27 // pred_fallthru
          _
        // Predicated region
        $region33: #{tpu_custom_call.1} parent=27 // pred_check
          %p186 = pneg %p81
        $region34: #{tpu_custom_call.1} parent=27 // pred_check_branch
          %188 = sbr.rel (%p186) target = $region36
        $region35: #{tpu_custom_call.1} parent=27 // pred_region
          %190 = dma.done [#allocation6], 1024
        $region36: #{tpu_custom_call.1} parent=27 // pred_fallthru
          _
        %s191 = sand.u32 %s42, 1
        %s192 = scalar_lea.sflag [#allocation3], %s191
        %s193 = sand.u32 %s42, 1
        %s194 = smul.addr %s193, 64
        %s195 = scalar_lea.vmem [#allocation2], %s194
        %p196 = pneg %p55
        %p197 = pneg %p52
        %p198 = pneg %p81
        %p199 = pneg %p78
        %p200 = pneg %p109
        %p201 = pneg %p106
        %s202 = sand.u32 %s96, 1
        %s203 = scalar_lea.sflag [#allocation4], %s202
        %s204 = sand.u32 %s96, 1
        %s205 = smul.addr %s204, 64
        %s206 = scalar_lea.vmem [#allocation7], %s205
        %s207 = smul.u32 8, %s24
        %s208 = smul.u32 8, %s24
        %s209 = smul.u32 8, %s24
        %v210 = vld [vmem:[%s180] sm:$0xff]
        %v211 = vld [vmem:[%s180 + $0x8] sm:$0xff]
        %v212 = vld [vmem:[%s180 + $0x10] sm:$0xff]
        %v213 = vld [vmem:[%s180 + $0x18] sm:$0xff]
        %v214 = vld [vmem:[%s180 + $0x20] sm:$0xff]
        %v215 = vld [vmem:[%s180 + $0x28] sm:$0xff]
        %v216 = vld [vmem:[%s180 + $0x30] sm:$0xff]
        %v217 = vld [vmem:[%s180 + $0x38] sm:$0xff]
        %v218 = vld [vmem:[#allocation5] sm:$0xff]
        %v219 = vld [vmem:[#allocation5 + $0x8] sm:$0xff]
        %v220 = vld [vmem:[#allocation5 + $0x10] sm:$0xff]
        %v221 = vld [vmem:[#allocation5 + $0x18] sm:$0xff]
        %v222 = vld [vmem:[#allocation5 + $0x20] sm:$0xff]
        %v223 = vld [vmem:[#allocation5 + $0x28] sm:$0xff]
        %v224 = vld [vmem:[#allocation5 + $0x30] sm:$0xff]
        %v225 = vld [vmem:[#allocation5 + $0x38] sm:$0xff]
        %v226 = vadd.f32 %v210, %v218
        %v227 = vadd.f32 %v211, %v219
        %v228 = vadd.f32 %v212, %v220
        %v229 = vadd.f32 %v213, %v221
        %v230 = vadd.f32 %v214, %v222
        %v231 = vadd.f32 %v215, %v223
        %v232 = vadd.f32 %v216, %v224
        %v233 = vadd.f32 %v217, %v225
        %234 = vst [vmem:[%s206] sm:$0xff] %v226
        %235 = vst [vmem:[%s206 + $0x8] sm:$0xff] %v227
        %236 = vst [vmem:[%s206 + $0x10] sm:$0xff] %v228
        %237 = vst [vmem:[%s206 + $0x18] sm:$0xff] %v229
        %238 = vst [vmem:[%s206 + $0x20] sm:$0xff] %v230
        %239 = vst [vmem:[%s206 + $0x28] sm:$0xff] %v231
        %240 = vst [vmem:[%s206 + $0x30] sm:$0xff] %v232
        %241 = vst [vmem:[%s206 + $0x38] sm:$0xff] %v233
        %s242 = sand.u32 %s96, 1
        %s243 = scalar_lea.sflag [#allocation4], %s242
        %s244 = sand.u32 %s96, 1
        %s245 = smul.addr %s244, 64
        %s246 = scalar_lea.vmem [#allocation7], %s245
        // Predicated region
        $region37: #{tpu_custom_call.1} parent=27 // pred_check
          %p247 = pneg %p106
        $region38: #{tpu_custom_call.1} parent=27 // pred_check_branch
          %249 = sbr.rel (%p247) target = $region40
        $region39: #{tpu_custom_call.1} parent=27 // pred_region
          %s250 = smul.u32 8, %s24
          %252 = vsyncadd %s243, 0
          %s253 = smul.addr %s25, 8
          %s254 = sadd.s32 %s250, %s253
          %s255 = smul.addr %s254, 8
          %s256 = scalar_lea.hbm %s2, %s255
          %s257 = sshll.u32 %s246, 4
          %s258 = int_to_ptr.vmem [resolvable:$true] %s257
          %s259 = sshll.u32 %s256, 4
          %s260 = int_to_ptr.hbm [resolvable:$true] %s259
          %265 = dma.vmem_to_hbm [thread:$0]  %s258, 1024, %s260, %s243, 128, 128, 8
        $region40: #{tpu_custom_call.1} parent=27 // pred_fallthru
          _
      $region28: #{tpu_custom_call.1} parent=5 // pred_fallthru
        _
      %p266 = scmp.le.s32.totalorder 2, %s15
      // Predicated region
      $region41: #{tpu_custom_call.1} parent=5 // pred_check
        %p267 = pneg %p266
      $region42: #{tpu_custom_call.1} parent=5 // pred_check_branch
        %269 = sbr.rel (%p267) target = $region44
      $region43: #{tpu_custom_call.1} parent=5 // pred_region
        %s270 = ssub.s32 %s15, 2
        // Predicated region
        $region45: #{tpu_custom_call.1} parent=43 // pred_check
          %p271 = pneg %p112
        $region46: #{tpu_custom_call.1} parent=43 // pred_check_branch
          %273 = sbr.rel (%p271) target = $region48
        $region47: #{tpu_custom_call.1} parent=43 // pred_region
          %s274 = sand.u32 %s97, 1
          %s275 = scalar_lea.sflag [#allocation4], %s274
          %s276 = sand.u32 %s97, 1
          %s277 = smul.addr %s276, 64
          %s278 = scalar_lea.vmem [#allocation7], %s277
          %280 = dma.done %s275, 1024
        $region48: #{tpu_custom_call.1} parent=43 // pred_fallthru
          _
      $region44: #{tpu_custom_call.1} parent=5 // pred_fallthru
        _
    $region6: #{tpu_custom_call.1} parent=1 // loop_footer
      %s19 = sadd.s32 1, %s15
    $region7: #{tpu_custom_call.1} parent=1 // loop_footer_branch
      %14 = sbr.rel target = $region3
    $region8: #{tpu_custom_call.1} parent=1 // loop_exit
      _
    %281 = vsyncpa [#allocation3], 1
    %s282 = scalar_lea.sflag [#allocation3], 1
    %283 = vsyncpa %s282, 1
    %284 = vsyncpa [#allocation6], 1
    %285 = vsyncpa [#allocation4], 1
    %s286 = scalar_lea.sflag [#allocation4], 1
    %287 = vsyncpa %s286, 1

</llo_original>
